<compile_context>
chip_gen: v7x
topology: tpu7x:2x2x1
jax: 0.10.0
libtpu: 0.0.40
codegen_flags: <defaults>
</compile_context>

<pallas_src>
import jax
import jax.numpy as jnp
from jax.experimental import pallas as pl
from jax.experimental.pallas import tpu as pltpu


def _round_up(n, m):
    return (n + m - 1) // m * m


def _encoder_kernel(x_ref, w1_ref, g1_ref, be1_ref,
                    w2_ref, g2_ref, be2_ref,
                    w3_ref, b3_ref, out_ref):
    eps = jnp.float32(1e-5)
    inv_b = jnp.float32(1.0 / x_ref.shape[0])

    def bn_relu(h, g, be):
        # Single-pass stats (E[h], E[h^2]) + folded affine:
        #   scale = g * rsqrt(var + eps);  shift = be - mu * scale
        mu = jnp.sum(h, axis=0, keepdims=True) * inv_b
        ex2 = jnp.sum(h * h, axis=0, keepdims=True) * inv_b
        var = ex2 - mu * mu
        scale = g * jax.lax.rsqrt(var + eps)
        shift = be - mu * scale
        return jnp.maximum(h * scale + shift, 0.0)

    # ---- fc1 (bias omitted: cancelled by BN mean subtraction) + BN + ReLU ---
    h = jnp.dot(x_ref[...], w1_ref[...], preferred_element_type=jnp.float32)
    h = bn_relu(h, g1_ref[...], be1_ref[...])

    # ---- fc2 (bias omitted) + BN + ReLU -------------------------------------
    h = jnp.dot(h, w2_ref[...], preferred_element_type=jnp.float32)
    h = bn_relu(h, g2_ref[...], be2_ref[...])

    # ---- fc3 + F.normalize(p=2, dim=1) --------------------------------------
    # Padded columns of w3/b3 are zero, so padded lanes of z are exactly zero
    # and contribute nothing to the sum of squares -> normalization stays exact.
    z = jnp.dot(h, w3_ref[...], preferred_element_type=jnp.float32) + b3_ref[...]
    ssq = jnp.sum(z * z, axis=1, keepdims=True)
    # z * rsqrt(max(ssq, 1e-24))  ==  z / max(||z||, 1e-12)  (F.normalize clamp)
    out_ref[...] = z * jax.lax.rsqrt(jnp.maximum(ssq, jnp.float32(1e-24)))


def molecular_encoder(x, params):
    """x: [B, input_dim] float32 -> [B, latent_dim] float32 (unit L2 rows)."""
    (w1, b1, g1, be1, w2, b2, g2, be2, w3, b3) = params
    del b1, b2  # exactly cancelled by training-mode BatchNorm mean subtraction

    B, F = x.shape
    H1 = w1.shape[1]          # 256
    H2 = w2.shape[1]          # 128
    L = w3.shape[1]           # latent_dim

    # Pad the fc1 contraction dim and the output feature dim to lane-friendly
    # multiples of 128 (zero padding -> numerically exact).
    Fp = _round_up(max(F, 128), 128)
    Lp = _round_up(max(L, 128), 128)

    xp = jnp.pad(x.astype(jnp.float32), ((0, 0), (0, Fp - F)))
    w1p = jnp.pad(w1, ((0, Fp - F), (0, 0)))
    w3p = jnp.pad(w3, ((0, 0), (0, Lp - L)))
    b3p = jnp.pad(b3, ((0, 0), (0, Lp - L)))

    vmem = pl.BlockSpec(memory_space=pltpu.MemorySpace.VMEM)

    flops = 2 * B * (Fp * H1 + H1 * H2 + H2 * Lp)
    transcendentals = H1 + H2 + B  # rsqrt per BN feature + per output row
    bytes_accessed = 4 * (B * Fp + Fp * H1 + 2 * H1 + H1 * H2 + 2 * H2
                          + H2 * Lp + Lp + B * Lp)

    out_padded = pl.pallas_call(
        _encoder_kernel,
        out_shape=jax.ShapeDtypeStruct((B, Lp), jnp.float32),
        in_specs=[vmem] * 9,
        out_specs=vmem,
        cost_estimate=pl.CostEstimate(
            flops=flops,
            transcendentals=transcendentals,
            bytes_accessed=bytes_accessed),
        compiler_params=pltpu.CompilerParams(
            vmem_limit_bytes=48 * 1024 * 1024),  # fits v7x's 64 MiB VMEM
    )(xp, w1p, g1, be1, w2p_or(w2), g2, be2, w3p, b3p) if False else pl.pallas_call(
        _encoder_kernel,
        out_shape=jax.ShapeDtypeStruct((B, Lp), jnp.float32),
        in_specs=[vmem] * 9,
        out_specs=vmem,
        cost_estimate=pl.CostEstimate(
            flops=flops,
            transcendentals=transcendentals,
            bytes_accessed=bytes_accessed),
        compiler_params=pltpu.CompilerParams(
            vmem_limit_bytes=48 * 1024 * 1024),
    )(xp, w1p, g1, be1, w2, g2, be2, w3p, b3p)

    return out_padded[:, :L]


def w2p_or(w2):  # placeholder never executed (kept for the dead branch above)
    return w2


def init_params(key, input_dim, latent_dim):
    """Deterministic synthetic parameters (PyTorch-Linear-style uniform init)."""
    def linear(key, fan_in, fan_out):
        kw, kb = jax.random.split(key)
        bound = 1.0 / jnp.sqrt(fan_in)
        w = jax.random.uniform(kw, (fan_in, fan_out), jnp.float32, -bound, bound)
        b = jax.random.uniform(kb, (1, fan_out), jnp.float32, -bound, bound)
        return w, b

    k1, k2, k3 = jax.random.split(key, 3)
    w1, b1 = linear(k1, input_dim, 256)
    w2, b2 = linear(k2, 256, 128)
    w3, b3 = linear(k3, 128, latent_dim)
    # BatchNorm1d default affine params: weight=1, bias=0
    g1, be1 = jnp.ones((1, 256), jnp.float32), jnp.zeros((1, 256), jnp.float32)
    g2, be2 = jnp.ones((1, 128), jnp.float32), jnp.zeros((1, 128), jnp.float32)
    return (w1, b1, g1, be1, w2, b2, g2, be2, w3, b3)


def _reference(x, params):
    """Pure-JAX reference matching the PyTorch forward (training-mode BN)."""
    (w1, b1, g1, be1, w2, b2, g2, be2, w3, b3) = params
    eps = 1e-5

    def bn_relu(h, g, be):
        mu = jnp.mean(h, axis=0, keepdims=True)
        var = jnp.mean((h - mu) ** 2, axis=0, keepdims=True)
        return jnp.maximum((h - mu) / jnp.sqrt(var + eps) * g + be, 0.0)

    h = bn_relu(x @ w1 + b1, g1, be1)
    h = bn_relu(h @ w2 + b2, g2, be2)
    z = h @ w3 + b3
    n = jnp.sqrt(jnp.sum(z * z, axis=1, keepdims=True))
    return z / jnp.maximum(n, 1e-12)


if __name__ == "__main__":
    B, input_dim, latent_dim = 8, 16, 32

    key = jax.random.PRNGKey(0)
    kx, kp = jax.random.split(key)
    x = jax.random.normal(kx, (B, input_dim), jnp.float32)
    params = init_params(kp, input_dim, latent_dim)

    out = molecular_encoder(x, params)
    out = jax.block_until_ready(out)

    ref = _reference(x, params)
    assert out.shape == (B, latent_dim)
    assert jnp.allclose(out, ref, atol=1e-4, rtol=1e-4), "mismatch vs reference"
    print("KERNEL_OK")
</pallas_src>

<mosaic_0001>
module attributes {stable_mosaic.version = 11 : i64} {
  func.func @_encoder_kernel(%arg0: memref<8x128xf32, #tpu.memory_space<vmem>>, %arg1: memref<128x256xf32, #tpu.memory_space<vmem>>, %arg2: memref<1x256xf32, #tpu.memory_space<vmem>>, %arg3: memref<1x256xf32, #tpu.memory_space<vmem>>, %arg4: memref<256x128xf32, #tpu.memory_space<vmem>>, %arg5: memref<1x128xf32, #tpu.memory_space<vmem>>, %arg6: memref<1x128xf32, #tpu.memory_space<vmem>>, %arg7: memref<128x128xf32, #tpu.memory_space<vmem>>, %arg8: memref<1x128xf32, #tpu.memory_space<vmem>>, %arg9: memref<8x128xf32, #tpu.memory_space<vmem>>) attributes {dimension_semantics = [], scalar_prefetch = 0 : i64, scratch_operands = 0 : i64, tpu.core_type = #tpu.core_type<tc>} {
    %c0 = arith.constant 0 : index
    %c0_0 = arith.constant 0 : index
    %0 = vector.load %arg0[%c0, %c0_0] : memref<8x128xf32, #tpu.memory_space<vmem>>, vector<8x128xf32>
    %c0_1 = arith.constant 0 : index
    %c0_2 = arith.constant 0 : index
    %1 = vector.load %arg1[%c0_1, %c0_2] : memref<128x256xf32, #tpu.memory_space<vmem>>, vector<128x256xf32>
    %cst = arith.constant dense<0.000000e+00> : vector<8x256xf32>
    %2 = tpu.matmul %0, %1, %cst {dimension_numbers = #tpu.dot_dimension_numbers<[1], [0], [0], [1], [0, 0, 1, 1], [], []>} : vector<8x128xf32>, vector<128x256xf32>, vector<8x256xf32> -> vector<8x256xf32>
    %c0_3 = arith.constant 0 : index
    %c0_4 = arith.constant 0 : index
    %3 = vector.load %arg2[%c0_3, %c0_4] : memref<1x256xf32, #tpu.memory_space<vmem>>, vector<1x256xf32>
    %c0_5 = arith.constant 0 : index
    %c0_6 = arith.constant 0 : index
    %4 = vector.load %arg3[%c0_5, %c0_6] : memref<1x256xf32, #tpu.memory_space<vmem>>, vector<1x256xf32>
    %cst_7 = arith.constant dense<0.000000e+00> : vector<256xf32>
    %5 = vector.multi_reduction <add>, %2, %cst_7 [0] : vector<8x256xf32> to vector<256xf32>
    %6 = vector.shape_cast %5 : vector<256xf32> to vector<1x256xf32>
    %cst_8 = arith.constant 1.250000e-01 : f32
    %7 = vector.broadcast %cst_8 : f32 to vector<1x256xf32>
    %8 = arith.mulf %6, %7 : vector<1x256xf32>
    %9 = arith.mulf %2, %2 : vector<8x256xf32>
    %cst_9 = arith.constant dense<0.000000e+00> : vector<256xf32>
    %10 = vector.multi_reduction <add>, %9, %cst_9 [0] : vector<8x256xf32> to vector<256xf32>
    %11 = vector.shape_cast %10 : vector<256xf32> to vector<1x256xf32>
    %cst_10 = arith.constant 1.250000e-01 : f32
    %12 = vector.broadcast %cst_10 : f32 to vector<1x256xf32>
    %13 = arith.mulf %11, %12 : vector<1x256xf32>
    %14 = arith.mulf %8, %8 : vector<1x256xf32>
    %15 = arith.subf %13, %14 : vector<1x256xf32>
    %cst_11 = arith.constant 9.99999974E-6 : f32
    %16 = vector.broadcast %cst_11 : f32 to vector<1x256xf32>
    %17 = arith.addf %15, %16 : vector<1x256xf32>
    %18 = math.rsqrt %17 : vector<1x256xf32>
    %19 = arith.mulf %3, %18 : vector<1x256xf32>
    %20 = arith.mulf %8, %19 : vector<1x256xf32>
    %21 = arith.subf %4, %20 : vector<1x256xf32>
    %22 = vector.broadcast %19 : vector<1x256xf32> to vector<8x256xf32>
    %23 = arith.mulf %2, %22 : vector<8x256xf32>
    %24 = vector.broadcast %21 : vector<1x256xf32> to vector<8x256xf32>
    %25 = arith.addf %23, %24 : vector<8x256xf32>
    %cst_12 = arith.constant 0.000000e+00 : f32
    %26 = vector.broadcast %cst_12 : f32 to vector<8x256xf32>
    %27 = arith.maximumf %25, %26 : vector<8x256xf32>
    %c0_13 = arith.constant 0 : index
    %c0_14 = arith.constant 0 : index
    %28 = vector.load %arg4[%c0_13, %c0_14] : memref<256x128xf32, #tpu.memory_space<vmem>>, vector<256x128xf32>
    %cst_15 = arith.constant dense<0.000000e+00> : vector<8x128xf32>
    %29 = tpu.matmul %27, %28, %cst_15 {dimension_numbers = #tpu.dot_dimension_numbers<[1], [0], [0], [1], [0, 0, 1, 1], [], []>} : vector<8x256xf32>, vector<256x128xf32>, vector<8x128xf32> -> vector<8x128xf32>
    %c0_16 = arith.constant 0 : index
    %c0_17 = arith.constant 0 : index
    %30 = vector.load %arg5[%c0_16, %c0_17] : memref<1x128xf32, #tpu.memory_space<vmem>>, vector<1x128xf32>
    %c0_18 = arith.constant 0 : index
    %c0_19 = arith.constant 0 : index
    %31 = vector.load %arg6[%c0_18, %c0_19] : memref<1x128xf32, #tpu.memory_space<vmem>>, vector<1x128xf32>
    %cst_20 = arith.constant dense<0.000000e+00> : vector<128xf32>
    %32 = vector.multi_reduction <add>, %29, %cst_20 [0] : vector<8x128xf32> to vector<128xf32>
    %33 = vector.shape_cast %32 : vector<128xf32> to vector<1x128xf32>
    %cst_21 = arith.constant 1.250000e-01 : f32
    %34 = vector.broadcast %cst_21 : f32 to vector<1x128xf32>
    %35 = arith.mulf %33, %34 : vector<1x128xf32>
    %36 = arith.mulf %29, %29 : vector<8x128xf32>
    %cst_22 = arith.constant dense<0.000000e+00> : vector<128xf32>
    %37 = vector.multi_reduction <add>, %36, %cst_22 [0] : vector<8x128xf32> to vector<128xf32>
    %38 = vector.shape_cast %37 : vector<128xf32> to vector<1x128xf32>
    %cst_23 = arith.constant 1.250000e-01 : f32
    %39 = vector.broadcast %cst_23 : f32 to vector<1x128xf32>
    %40 = arith.mulf %38, %39 : vector<1x128xf32>
    %41 = arith.mulf %35, %35 : vector<1x128xf32>
    %42 = arith.subf %40, %41 : vector<1x128xf32>
    %cst_24 = arith.constant 9.99999974E-6 : f32
    %43 = vector.broadcast %cst_24 : f32 to vector<1x128xf32>
    %44 = arith.addf %42, %43 : vector<1x128xf32>
    %45 = math.rsqrt %44 : vector<1x128xf32>
    %46 = arith.mulf %30, %45 : vector<1x128xf32>
    %47 = arith.mulf %35, %46 : vector<1x128xf32>
    %48 = arith.subf %31, %47 : vector<1x128xf32>
    %49 = vector.broadcast %46 : vector<1x128xf32> to vector<8x128xf32>
    %50 = arith.mulf %29, %49 : vector<8x128xf32>
    %51 = vector.broadcast %48 : vector<1x128xf32> to vector<8x128xf32>
    %52 = arith.addf %50, %51 : vector<8x128xf32>
    %cst_25 = arith.constant 0.000000e+00 : f32
    %53 = vector.broadcast %cst_25 : f32 to vector<8x128xf32>
    %54 = arith.maximumf %52, %53 : vector<8x128xf32>
    %c0_26 = arith.constant 0 : index
    %c0_27 = arith.constant 0 : index
    %55 = vector.load %arg7[%c0_26, %c0_27] : memref<128x128xf32, #tpu.memory_space<vmem>>, vector<128x128xf32>
    %cst_28 = arith.constant dense<0.000000e+00> : vector<8x128xf32>
    %56 = tpu.matmul %54, %55, %cst_28 {dimension_numbers = #tpu.dot_dimension_numbers<[1], [0], [0], [1], [0, 0, 1, 1], [], []>} : vector<8x128xf32>, vector<128x128xf32>, vector<8x128xf32> -> vector<8x128xf32>
    %c0_29 = arith.constant 0 : index
    %c0_30 = arith.constant 0 : index
    %57 = vector.load %arg8[%c0_29, %c0_30] : memref<1x128xf32, #tpu.memory_space<vmem>>, vector<1x128xf32>
    %58 = vector.broadcast %57 : vector<1x128xf32> to vector<8x128xf32>
    %59 = arith.addf %56, %58 : vector<8x128xf32>
    %60 = arith.mulf %59, %59 : vector<8x128xf32>
    %cst_31 = arith.constant dense<0.000000e+00> : vector<8xf32>
    %61 = vector.multi_reduction <add>, %60, %cst_31 [1] : vector<8x128xf32> to vector<8xf32>
    %62 = vector.shape_cast %61 : vector<8xf32> to vector<8x1xf32>
    %cst_32 = arith.constant 1.000000e-24 : f32
    %63 = vector.broadcast %cst_32 : f32 to vector<8x1xf32>
    %64 = arith.maximumf %62, %63 : vector<8x1xf32>
    %65 = math.rsqrt %64 : vector<8x1xf32>
    %66 = vector.broadcast %65 : vector<8x1xf32> to vector<8x128xf32>
    %67 = arith.mulf %59, %66 : vector<8x128xf32>
    %c0_33 = arith.constant 0 : index
    %c0_34 = arith.constant 0 : index
    %68 = vector.load %arg9[%c0_33, %c0_34] : memref<8x128xf32, #tpu.memory_space<vmem>>, vector<8x128xf32>
    tpu.vector_store %arg9[%c0_33, %c0_34], %67 {strides = array<i32>} : memref<8x128xf32, #tpu.memory_space<vmem>>, vector<8x128xf32>,
    return
  }
}

</mosaic_0001>

<llo_original>
// kernel: tpu_custom_call.1
$region0: #{tpu_custom_call.1}
  #allocation0 [shape = 'u32[]', space=smem, size = 0x4, offset = 0x4, fixed_abs, tag = 'smem constant byte address 0x4 - core index']
  #allocation1 [shape = 'u32[144,128]{1,0:T(1,128)}', space=vmem, size = 0x12000, scoped, tag = 'internal scratch']
  %s0 = inlined_call_operand.hbm [shape: f32[8,128], index: 0, kind: input, shape index: {}]
  %s1 = inlined_call_operand.hbm [shape: f32[128,256], index: 1, kind: input, shape index: {}]
  %s2 = inlined_call_operand.vmem [shape: f32[1,256], index: 2, kind: input, shape index: {}]
  %s3 = inlined_call_operand.vmem [shape: f32[1,256], index: 3, kind: input, shape index: {}]
  %s4 = inlined_call_operand.hbm [shape: f32[256,128], index: 4, kind: input, shape index: {}]
  %s5 = inlined_call_operand.vmem [shape: f32[1,128], index: 5, kind: input, shape index: {}]
  %s6 = inlined_call_operand.vmem [shape: f32[1,128], index: 6, kind: input, shape index: {}]
  %s7 = inlined_call_operand.hbm [shape: f32[128,128], index: 7, kind: input, shape index: {}]
  %s8 = inlined_call_operand.vmem [shape: f32[1,128], index: 8, kind: input, shape index: {}]
  %s9 = inlined_call_operand.hbm [shape: f32[8,128], index: 9, kind: output, shape index: {}]
  %s10 = sld [smem:[#allocation0]]
  $region62: #{tpu_custom_call.1} parent=0
    _
  %s12 = ssub.s32 1, %s10
  %s13 = scalar_select 0, %s12, %s10
  $region1: #{tpu_custom_call.1} parent=0
    #allocation2 [shape = 'u8[4096]{0}', space=vmem, size = 0x1000, scoped, tag = 'input window, operand 0, single buffered']
    #allocation3 [shape = 's32[1]{0}', space=sflag, size = 0x4, scoped, tag = 'scoped memory for tpu_custom_call.1']
    #allocation4 [shape = 's32[1]{0}', space=sflag, size = 0x4, scoped, tag = 'scoped memory for tpu_custom_call.1']
    #allocation5 [shape = 'u8[131072]{0}', space=vmem, size = 0x20000, scoped, tag = 'input window, operand 1, single buffered']
    #allocation6 [shape = 's32[1]{0}', space=sflag, size = 0x4, scoped, tag = 'scoped memory for tpu_custom_call.1']
    #allocation7 [shape = 'u8[131072]{0}', space=vmem, size = 0x20000, scoped, tag = 'input window, operand 4, single buffered']
    #allocation8 [shape = 'u8[65536]{0}', space=vmem, size = 0x10000, scoped, tag = 'input window, operand 7, single buffered']
    #allocation9 [shape = 's32[1]{0}', space=sflag, size = 0x4, scoped, tag = 'scoped memory for tpu_custom_call.1']
    #allocation10 [shape = 'u8[4096]{0}', space=vmem, size = 0x1000, scoped, tag = 'output window, operand 0, single buffered']
    %14 = vsyncpa [#allocation3], 0
    %15 = vsyncpa [#allocation6], 0
    %16 = vsyncpa [#allocation9], 0
    %17 = vsyncpa [#allocation4], 0
    // Predicated region
    $region2: #{tpu_custom_call.1} parent=1 // pred_check
      _
    $region3: #{tpu_custom_call.1} parent=1 // pred_check_branch
      %19 = sbr.rel (0) target = $region5
    $region4: #{tpu_custom_call.1} parent=1 // pred_region
      %s21 = ssub.s32 128, 128
      %22 = vsyncadd [#allocation3], %s21
      %s24 = sshll.u32 [#allocation2], 4
      %s25 = int_to_ptr.vmem [resolvable:$true] %s24
      %27 = dma.hbm_to_vmem [thread:$0]  %s0, 128, %s25, [#allocation3]
    $region5: #{tpu_custom_call.1} parent=1 // pred_fallthru
      _
    // Predicated region
    $region6: #{tpu_custom_call.1} parent=1 // pred_check
      _
    $region7: #{tpu_custom_call.1} parent=1 // pred_check_branch
      %29 = sbr.rel (0) target = $region9
    $region8: #{tpu_custom_call.1} parent=1 // pred_region
      %s31 = ssub.s32 4096, 4096
      %32 = vsyncadd [#allocation6], %s31
      %s33 = sshll.u32 [#allocation5], 4
      %s34 = int_to_ptr.vmem [resolvable:$true] %s33
      %39 = dma.hbm_to_vmem [thread:$0]  %s1, 4096, %s34, [#allocation6], 256, 256, 16
    $region9: #{tpu_custom_call.1} parent=1 // pred_fallthru
      _
    // Predicated region
    $region10: #{tpu_custom_call.1} parent=1 // pred_check
      _
    $region11: #{tpu_custom_call.1} parent=1 // pred_check_branch
      %41 = sbr.rel (0) target = $region13
    $region12: #{tpu_custom_call.1} parent=1 // pred_region
      _
    $region13: #{tpu_custom_call.1} parent=1 // pred_fallthru
      _
    // Predicated region
    $region14: #{tpu_custom_call.1} parent=1 // pred_check
      _
    $region15: #{tpu_custom_call.1} parent=1 // pred_check_branch
      %43 = sbr.rel (0) target = $region17
    $region16: #{tpu_custom_call.1} parent=1 // pred_region
      _
    $region17: #{tpu_custom_call.1} parent=1 // pred_fallthru
      _
    // Predicated region
    $region18: #{tpu_custom_call.1} parent=1 // pred_check
      _
    $region19: #{tpu_custom_call.1} parent=1 // pred_check_branch
      %45 = sbr.rel (0) target = $region21
    $region20: #{tpu_custom_call.1} parent=1 // pred_region
      %s47 = ssub.s32 4096, 4096
      %48 = vsyncadd [#allocation6], %s47
      %s49 = sshll.u32 [#allocation7], 4
      %s50 = int_to_ptr.vmem [resolvable:$true] %s49
      %55 = dma.hbm_to_vmem [thread:$0]  %s4, 4096, %s50, [#allocation6], 128, 128, 8
    $region21: #{tpu_custom_call.1} parent=1 // pred_fallthru
      _
    // Predicated region
    $region22: #{tpu_custom_call.1} parent=1 // pred_check
      _
    $region23: #{tpu_custom_call.1} parent=1 // pred_check_branch
      %57 = sbr.rel (0) target = $region25
    $region24: #{tpu_custom_call.1} parent=1 // pred_region
      _
    $region25: #{tpu_custom_call.1} parent=1 // pred_fallthru
      _
    // Predicated region
    $region26: #{tpu_custom_call.1} parent=1 // pred_check
      _
    $region27: #{tpu_custom_call.1} parent=1 // pred_check_branch
      %59 = sbr.rel (0) target = $region29
    $region28: #{tpu_custom_call.1} parent=1 // pred_region
      _
    $region29: #{tpu_custom_call.1} parent=1 // pred_fallthru
      _
    // Predicated region
    $region30: #{tpu_custom_call.1} parent=1 // pred_check
      _
    $region31: #{tpu_custom_call.1} parent=1 // pred_check_branch
      %61 = sbr.rel (0) target = $region33
    $region32: #{tpu_custom_call.1} parent=1 // pred_region
      %s63 = ssub.s32 2048, 2048
      %64 = vsyncadd [#allocation9], %s63
      %s65 = sshll.u32 [#allocation8], 4
      %s66 = int_to_ptr.vmem [resolvable:$true] %s65
      %71 = dma.hbm_to_vmem [thread:$0]  %s7, 2048, %s66, [#allocation9], 128, 128, 8
    $region33: #{tpu_custom_call.1} parent=1 // pred_fallthru
      _
    // Predicated region
    $region34: #{tpu_custom_call.1} parent=1 // pred_check
      _
    $region35: #{tpu_custom_call.1} parent=1 // pred_check_branch
      %73 = sbr.rel (0) target = $region37
    $region36: #{tpu_custom_call.1} parent=1 // pred_region
      _
    $region37: #{tpu_custom_call.1} parent=1 // pred_fallthru
      _
    // Predicated region
    $region38: #{tpu_custom_call.1} parent=1 // pred_check
      _
    $region39: #{tpu_custom_call.1} parent=1 // pred_check_branch
      %75 = sbr.rel (0) target = $region41
    $region40: #{tpu_custom_call.1} parent=1 // pred_region
      %76 = dma.done [#allocation3], 128
    $region41: #{tpu_custom_call.1} parent=1 // pred_fallthru
      _
    // Predicated region
    $region42: #{tpu_custom_call.1} parent=1 // pred_check
      _
    $region43: #{tpu_custom_call.1} parent=1 // pred_check_branch
      %78 = sbr.rel (0) target = $region45
    $region44: #{tpu_custom_call.1} parent=1 // pred_region
      %79 = dma.done [#allocation6], 4096
    $region45: #{tpu_custom_call.1} parent=1 // pred_fallthru
      _
    // Predicated region
    $region46: #{tpu_custom_call.1} parent=1 // pred_check
      _
    $region47: #{tpu_custom_call.1} parent=1 // pred_check_branch
      %81 = sbr.rel (0) target = $region49
    $region48: #{tpu_custom_call.1} parent=1 // pred_region
      %82 = dma.done [#allocation6], 4096
    $region49: #{tpu_custom_call.1} parent=1 // pred_fallthru
      _
    // Predicated region
    $region50: #{tpu_custom_call.1} parent=1 // pred_check
      _
    $region51: #{tpu_custom_call.1} parent=1 // pred_check_branch
      %84 = sbr.rel (0) target = $region53
    $region52: #{tpu_custom_call.1} parent=1 // pred_region
      %85 = dma.done [#allocation9], 2048
    $region53: #{tpu_custom_call.1} parent=1 // pred_fallthru
      _
    %v86 = vld [vmem:[#allocation2] sm:$0xff]
    %v87 = vld [vmem:[#allocation5] sm:$0xff]
    %v88 = vld [vmem:[#allocation5 + $0x8] sm:$0xff]
    %v89 = vld [vmem:[#allocation5 + $0x10] sm:$0xff]
    %v90 = vld [vmem:[#allocation5 + $0x18] sm:$0xff]
    %v91 = vld [vmem:[#allocation5 + $0x20] sm:$0xff]
    %v92 = vld [vmem:[#allocation5 + $0x28] sm:$0xff]
    %v93 = vld [vmem:[#allocation5 + $0x30] sm:$0xff]
    %v94 = vld [vmem:[#allocation5 + $0x38] sm:$0xff]
    %v95 = vld [vmem:[#allocation5 + $0x40] sm:$0xff]
    %v96 = vld [vmem:[#allocation5 + $0x48] sm:$0xff]
    %v97 = vld [vmem:[#allocation5 + $0x50] sm:$0xff]
    %v98 = vld [vmem:[#allocation5 + $0x58] sm:$0xff]
    %v99 = vld [vmem:[#allocation5 + $0x60] sm:$0xff]
    %v100 = vld [vmem:[#allocation5 + $0x68] sm:$0xff]
    %v101 = vld [vmem:[#allocation5 + $0x70] sm:$0xff]
    %v102 = vld [vmem:[#allocation5 + $0x78] sm:$0xff]
    %v103 = vld [vmem:[#allocation5 + $0x80] sm:$0xff]
    %v104 = vld [vmem:[#allocation5 + $0x88] sm:$0xff]
    %v105 = vld [vmem:[#allocation5 + $0x90] sm:$0xff]
    %v106 = vld [vmem:[#allocation5 + $0x98] sm:$0xff]
    %v107 = vld [vmem:[#allocation5 + $0xa0] sm:$0xff]
    %v108 = vld [vmem:[#allocation5 + $0xa8] sm:$0xff]
    %v109 = vld [vmem:[#allocation5 + $0xb0] sm:$0xff]
    %v110 = vld [vmem:[#allocation5 + $0xb8] sm:$0xff]
    %v111 = vld [vmem:[#allocation5 + $0xc0] sm:$0xff]
    %v112 = vld [vmem:[#allocation5 + $0xc8] sm:$0xff]
    %v113 = vld [vmem:[#allocation5 + $0xd0] sm:$0xff]
    %v114 = vld [vmem:[#allocation5 + $0xd8] sm:$0xff]
    %v115 = vld [vmem:[#allocation5 + $0xe0] sm:$0xff]
    %v116 = vld [vmem:[#allocation5 + $0xe8] sm:$0xff]
    %v117 = vld [vmem:[#allocation5 + $0xf0] sm:$0xff]
    %v118 = vld [vmem:[#allocation5 + $0xf8] sm:$0xff]
    %119 = vmatprep.subr.mxu0 %v88
    %120 = vmatpush1.msra.mxu0 %v87
    %121 = vmatprep.subr.mxu0 %v90
    %122 = vmatpush1.msra.mxu0 %v89
    %123 = vmatprep.subr.mxu0 %v92
    %124 = vmatpush1.msra.mxu0 %v91
    %125 = vmatprep.subr.mxu0 %v94
    %126 = vmatpush1.msra.mxu0 %v93
    %127 = vmatprep.subr.mxu0 %v96
    %128 = vmatpush1.msra.mxu0 %v95
    %129 = vmatprep.subr.mxu0 %v98
    %130 = vmatpush1.msra.mxu0 %v97
    %131 = vmatprep.subr.mxu0 %v100
    %132 = vmatpush1.msra.mxu0 %v99
    %133 = vmatprep.subr.mxu0 %v102
    %134 = vmatpush1.msra.mxu0 %v101
    %135 = vmatprep.subr.mxu0 %v104
    %136 = vmatpush1.msra.mxu0 %v103
    %137 = vmatprep.subr.mxu0 %v106
    %138 = vmatpush1.msra.mxu0 %v105
    %139 = vmatprep.subr.mxu0 %v108
    %140 = vmatpush1.msra.mxu0 %v107
    %141 = vmatprep.subr.mxu0 %v110
    %142 = vmatpush1.msra.mxu0 %v109
    %143 = vmatprep.subr.mxu0 %v112
    %144 = vmatpush1.msra.mxu0 %v111
    %145 = vmatprep.subr.mxu0 %v114
    %146 = vmatpush1.msra.mxu0 %v113
    %147 = vmatprep.subr.mxu0 %v116
    %148 = vmatpush1.msra.mxu0 %v115
    %149 = vmatprep.subr.mxu0 %v118
    %150 = vmatpush1.msra.mxu0 %v117
    %151 = vmatprep.subr.mxu0 0.0
    %152 = vmatpush1.msra.mxu0 0.0
    %153 = vmatprep.subr.mxu0 0.0
    %154 = vmatpush1.msra.mxu0 0.0
    %155 = vmatprep.subr.mxu0 0.0
    %156 = vmatpush1.msra.mxu0 0.0
    %157 = vmatprep.subr.mxu0 0.0
    %158 = vmatpush1.msra.mxu0 0.0
    %159 = vmatprep.subr.mxu0 0.0
    %160 = vmatpush1.msra.mxu0 0.0
    %161 = vmatprep.subr.mxu0 0.0
    %162 = vmatpush1.msra.mxu0 0.0
    %163 = vmatprep.subr.mxu0 0.0
    %164 = vmatpush1.msra.mxu0 0.0
    %165 = vmatprep.subr.mxu0 0.0
    %166 = vmatpush1.msra.mxu0 0.0
    %167 = vmatprep.subr.mxu0 0.0
    %168 = vmatpush1.msra.mxu0 0.0
    %169 = vmatprep.subr.mxu0 0.0
    %170 = vmatpush1.msra.mxu0 0.0
    %171 = vmatprep.subr.mxu0 0.0
    %172 = vmatpush1.msra.mxu0 0.0
    %173 = vmatprep.subr.mxu0 0.0
    %174 = vmatpush1.msra.mxu0 0.0
    %175 = vmatprep.subr.mxu0 0.0
    %176 = vmatpush1.msra.mxu0 0.0
    %177 = vmatprep.subr.mxu0 0.0
    %178 = vmatpush1.msra.mxu0 0.0
    %179 = vmatprep.subr.mxu0 0.0
    %180 = vmatpush1.msra.mxu0 0.0
    %181 = vmatprep.subr.mxu0 0.0
    %182 = vmatpush1.msra.mxu0 0.0
    %183 = vmatprep.mubr.f32.mxu0 0.0
    %184 = vmatmul.mubr.f32.gmra.mrb[0].mxu0 %v86
    %v185 = vpop.f32.mrb[0].mxu0
    %v186 = vadd.f32 0.0, %v185
    %v187 = vpop.f32.mrb[0].mxu0
    %v188 = vadd.f32 0.0, %v187
    %189 = vdwg.mxu0
    %v190 = vld [vmem:[%s2] sm:$0x3]
    %v191 = vld [vmem:[%s3] sm:$0x3]
    %v192 = vrot.slane %v186, 4
    %v193 = vadd.f32 %v186, %v192
    %v194 = vrot.slane %v193, 2
    %v195 = vadd.f32 %v193, %v194
    %v196 = vrot.slane %v195, 1
    %v197 = vadd.f32 %v195, %v196
    %v198 = vrot.slane %v188, 4
    %v199 = vadd.f32 %v188, %v198
    %v200 = vrot.slane %v199, 2
    %v201 = vadd.f32 %v199, %v200
    %v202 = vrot.slane %v201, 1
    %v203 = vadd.f32 %v201, %v202
    %v204 = vmul.f32 %v197, 0.125
    %v205 = vmul.f32 %v203, 0.125
    %v206 = vmul.f32 %v186, %v186
    %v207 = vmul.f32 %v188, %v188
    %v208 = vrot.slane %v206, 4
    %v209 = vadd.f32 %v206, %v208
    %v210 = vrot.slane %v209, 2
    %v211 = vadd.f32 %v209, %v210
    %v212 = vrot.slane %v211, 1
    %v213 = vadd.f32 %v211, %v212
    %v214 = vrot.slane %v207, 4
    %v215 = vadd.f32 %v207, %v214
    %v216 = vrot.slane %v215, 2
    %v217 = vadd.f32 %v215, %v216
    %v218 = vrot.slane %v217, 1
    %v219 = vadd.f32 %v217, %v218
    %v220 = vmul.f32 %v213, 0.125
    %v221 = vmul.f32 %v219, 0.125
    %v222 = vmul.f32 %v204, %v204
    %v223 = vmul.f32 %v205, %v205
    %v224 = vsub.f32 %v220, %v222
    %v225 = vsub.f32 %v221, %v223
    %v226 = vadd.f32 %v224, 1e-05
    %v227 = vadd.f32 %v225, 1e-05
    %v228 = vrsqrt.pop %v226
    %v229 = vrsqrt.pop %v227
    %v232 = vcombine.low %v228, %v229
    %v234 = vunpack.c.l.s4 1966171168
    %v235 = vunpack.c.0.s8 %v234
    %v236 = vlaneseq
    %v237 = vshrl.u32 %v236, 7
    %v238 = vsub.s32 %v235, %v237
    %v239 = vrot.slane %v232, %v238
    %v241 = vunpack.c.l.s4 1966171168
    %v242 = vunpack.c.0.s8 %v241
    %v243 = vlaneseq
    %v244 = vshrl.u32 %v243, 7
    %v245 = vsub.s32 %v242, %v244
    %v246 = vrot.slane %v239, %v245
    %v248 = vmul.f32 %v190, %v246
    %v250 = vlaneseq
    %v251 = vshrl.u32 %v250, 7
    %v252 = vsub.s32 0, %v251
    %v253 = vrot.slane %v248, %v252
    %v254 = vlaneseq
    %v255 = vshrl.u32 %v254, 7
    %v256 = vsub.s32 1, %v255
    %v257 = vrot.slane %v248, %v256
    %v260 = vmul.f32 %v204, %v253
    %v261 = vmul.f32 %v205, %v257
    %v264 = vcombine.low %v260, %v261
    %v266 = vunpack.c.l.s4 1966171168
    %v267 = vunpack.c.0.s8 %v266
    %v268 = vlaneseq
    %v269 = vshrl.u32 %v268, 7
    %v270 = vsub.s32 %v267, %v269
    %v271 = vrot.slane %v264, %v270
    %v273 = vunpack.c.l.s4 1966171168
    %v274 = vunpack.c.0.s8 %v273
    %v275 = vlaneseq
    %v276 = vshrl.u32 %v275, 7
    %v277 = vsub.s32 %v274, %v276
    %v278 = vrot.slane %v271, %v277
    %v280 = vsub.f32 %v191, %v278
    %v281 = vmul.f32 %v186, %v253
    %v282 = vmul.f32 %v188, %v257
    %v284 = vlaneseq
    %v285 = vshrl.u32 %v284, 7
    %v286 = vsub.s32 0, %v285
    %v287 = vrot.slane %v280, %v286
    %v288 = vlaneseq
    %v289 = vshrl.u32 %v288, 7
    %v290 = vsub.s32 1, %v289
    %v291 = vrot.slane %v280, %v290
    %v294 = vadd.f32 %v281, %v287
    %v295 = vadd.f32 %v282, %v291
    %v296 = vmax.f32 %v294, 0.0
    %v297 = vmax.f32 %v295, 0.0
    %v298 = vld [vmem:[#allocation7] sm:$0xff]
    %v299 = vld [vmem:[#allocation7 + $0x8] sm:$0xff]
    %v300 = vld [vmem:[#allocation7 + $0x10] sm:$0xff]
    %v301 = vld [vmem:[#allocation7 + $0x18] sm:$0xff]
    %v302 = vld [vmem:[#allocation7 + $0x20] sm:$0xff]
    %v303 = vld [vmem:[#allocation7 + $0x28] sm:$0xff]
    %v304 = vld [vmem:[#allocation7 + $0x30] sm:$0xff]
    %v305 = vld [vmem:[#allocation7 + $0x38] sm:$0xff]
    %v306 = vld [vmem:[#allocation7 + $0x40] sm:$0xff]
    %v307 = vld [vmem:[#allocation7 + $0x48] sm:$0xff]
    %v308 = vld [vmem:[#allocation7 + $0x50] sm:$0xff]
    %v309 = vld [vmem:[#allocation7 + $0x58] sm:$0xff]
    %v310 = vld [vmem:[#allocation7 + $0x60] sm:$0xff]
    %v311 = vld [vmem:[#allocation7 + $0x68] sm:$0xff]
    %v312 = vld [vmem:[#allocation7 + $0x70] sm:$0xff]
    %v313 = vld [vmem:[#allocation7 + $0x78] sm:$0xff]
    %v314 = vld [vmem:[#allocation7 + $0x80] sm:$0xff]
    %v315 = vld [vmem:[#allocation7 + $0x88] sm:$0xff]
    %v316 = vld [vmem:[#allocation7 + $0x90] sm:$0xff]
    %v317 = vld [vmem:[#allocation7 + $0x98] sm:$0xff]
    %v318 = vld [vmem:[#allocation7 + $0xa0] sm:$0xff]
    %v319 = vld [vmem:[#allocation7 + $0xa8] sm:$0xff]
    %v320 = vld [vmem:[#allocation7 + $0xb0] sm:$0xff]
    %v321 = vld [vmem:[#allocation7 + $0xb8] sm:$0xff]
    %v322 = vld [vmem:[#allocation7 + $0xc0] sm:$0xff]
    %v323 = vld [vmem:[#allocation7 + $0xc8] sm:$0xff]
    %v324 = vld [vmem:[#allocation7 + $0xd0] sm:$0xff]
    %v325 = vld [vmem:[#allocation7 + $0xd8] sm:$0xff]
    %v326 = vld [vmem:[#allocation7 + $0xe0] sm:$0xff]
    %v327 = vld [vmem:[#allocation7 + $0xe8] sm:$0xff]
    %v328 = vld [vmem:[#allocation7 + $0xf0] sm:$0xff]
    %v329 = vld [vmem:[#allocation7 + $0xf8] sm:$0xff]
    %330 = vmatprep.subr.mxu0 0.0
    %331 = vmatpush1.msra.mxu0 %v298
    %332 = vmatprep.subr.mxu0 0.0
    %333 = vmatpush1.msra.mxu0 %v299
    %334 = vmatprep.subr.mxu0 0.0
    %335 = vmatpush1.msra.mxu0 %v300
    %336 = vmatprep.subr.mxu0 0.0
    %337 = vmatpush1.msra.mxu0 %v301
    %338 = vmatprep.subr.mxu0 0.0
    %339 = vmatpush1.msra.mxu0 %v302
    %340 = vmatprep.subr.mxu0 0.0
    %341 = vmatpush1.msra.mxu0 %v303
    %342 = vmatprep.subr.mxu0 0.0
    %343 = vmatpush1.msra.mxu0 %v304
    %344 = vmatprep.subr.mxu0 0.0
    %345 = vmatpush1.msra.mxu0 %v305
    %346 = vmatprep.subr.mxu0 0.0
    %347 = vmatpush1.msra.mxu0 %v306
    %348 = vmatprep.subr.mxu0 0.0
    %349 = vmatpush1.msra.mxu0 %v307
    %350 = vmatprep.subr.mxu0 0.0
    %351 = vmatpush1.msra.mxu0 %v308
    %352 = vmatprep.subr.mxu0 0.0
    %353 = vmatpush1.msra.mxu0 %v309
    %354 = vmatprep.subr.mxu0 0.0
    %355 = vmatpush1.msra.mxu0 %v310
    %356 = vmatprep.subr.mxu0 0.0
    %357 = vmatpush1.msra.mxu0 %v311
    %358 = vmatprep.subr.mxu0 0.0
    %359 = vmatpush1.msra.mxu0 %v312
    %360 = vmatprep.subr.mxu0 0.0
    %361 = vmatpush1.msra.mxu0 %v313
    %362 = vmatprep.subr.mxu0 0.0
    %363 = vmatpush1.msra.mxu0 %v314
    %364 = vmatprep.subr.mxu0 0.0
    %365 = vmatpush1.msra.mxu0 %v315
    %366 = vmatprep.subr.mxu0 0.0
    %367 = vmatpush1.msra.mxu0 %v316
    %368 = vmatprep.subr.mxu0 0.0
    %369 = vmatpush1.msra.mxu0 %v317
    %370 = vmatprep.subr.mxu0 0.0
    %371 = vmatpush1.msra.mxu0 %v318
    %372 = vmatprep.subr.mxu0 0.0
    %373 = vmatpush1.msra.mxu0 %v319
    %374 = vmatprep.subr.mxu0 0.0
    %375 = vmatpush1.msra.mxu0 %v320
    %376 = vmatprep.subr.mxu0 0.0
    %377 = vmatpush1.msra.mxu0 %v321
    %378 = vmatprep.subr.mxu0 0.0
    %379 = vmatpush1.msra.mxu0 %v322
    %380 = vmatprep.subr.mxu0 0.0
    %381 = vmatpush1.msra.mxu0 %v323
    %382 = vmatprep.subr.mxu0 0.0
    %383 = vmatpush1.msra.mxu0 %v324
    %384 = vmatprep.subr.mxu0 0.0
    %385 = vmatpush1.msra.mxu0 %v325
    %386 = vmatprep.subr.mxu0 0.0
    %387 = vmatpush1.msra.mxu0 %v326
    %388 = vmatprep.subr.mxu0 0.0
    %389 = vmatpush1.msra.mxu0 %v327
    %390 = vmatprep.subr.mxu0 0.0
    %391 = vmatpush1.msra.mxu0 %v328
    %392 = vmatprep.subr.mxu0 0.0
    %393 = vmatpush1.msra.mxu0 %v329
    %394 = vmatprep.mubr.f32.mxu0 %v297
    %395 = vmatmul.mubr.f32.gmra.mrb[0].mxu0 %v296
    %v396 = vpop.f32.mrb[0].mxu0
    %v397 = vadd.f32 0.0, %v396
    %v398 = vpop.f32.mrb[0].mxu0
    %399 = vdwg.mxu0
    %v400 = vld [vmem:[%s5] sm:$0x1]
    %v401 = vld [vmem:[%s6] sm:$0x1]
    %v402 = vrot.slane %v397, 4
    %v403 = vadd.f32 %v397, %v402
    %v404 = vrot.slane %v403, 2
    %v405 = vadd.f32 %v403, %v404
    %v406 = vrot.slane %v405, 1
    %v407 = vadd.f32 %v405, %v406
    %v408 = vmul.f32 %v407, 0.125
    %v409 = vmul.f32 %v397, %v397
    %v410 = vrot.slane %v409, 4
    %v411 = vadd.f32 %v409, %v410
    %v412 = vrot.slane %v411, 2
    %v413 = vadd.f32 %v411, %v412
    %v414 = vrot.slane %v413, 1
    %v415 = vadd.f32 %v413, %v414
    %v416 = vmul.f32 %v415, 0.125
    %v417 = vmul.f32 %v408, %v408
    %v418 = vsub.f32 %v416, %v417
    %v419 = vadd.f32 %v418, 1e-05
    %v420 = vrsqrt.pop %v419
    %v421 = vmul.f32 %v400, %v420
    %v422 = vmul.f32 %v408, %v421
    %v423 = vsub.f32 %v401, %v422
    %v425 = vlaneseq
    %v426 = vshrl.u32 %v425, 7
    %v427 = vsub.s32 0, %v426
    %v428 = vrot.slane %v421, %v427
    %v430 = vmul.f32 %v397, %v428
    %v432 = vlaneseq
    %v433 = vshrl.u32 %v432, 7
    %v434 = vsub.s32 0, %v433
    %v435 = vrot.slane %v423, %v434
    %v437 = vadd.f32 %v430, %v435
    %v438 = vmax.f32 %v437, 0.0
    %v439 = vld [vmem:[#allocation8] sm:$0xff]
    %v440 = vld [vmem:[#allocation8 + $0x8] sm:$0xff]
    %v441 = vld [vmem:[#allocation8 + $0x10] sm:$0xff]
    %v442 = vld [vmem:[#allocation8 + $0x18] sm:$0xff]
    %v443 = vld [vmem:[#allocation8 + $0x20] sm:$0xff]
    %v444 = vld [vmem:[#allocation8 + $0x28] sm:$0xff]
    %v445 = vld [vmem:[#allocation8 + $0x30] sm:$0xff]
    %v446 = vld [vmem:[#allocation8 + $0x38] sm:$0xff]
    %v447 = vld [vmem:[#allocation8 + $0x40] sm:$0xff]
    %v448 = vld [vmem:[#allocation8 + $0x48] sm:$0xff]
    %v449 = vld [vmem:[#allocation8 + $0x50] sm:$0xff]
    %v450 = vld [vmem:[#allocation8 + $0x58] sm:$0xff]
    %v451 = vld [vmem:[#allocation8 + $0x60] sm:$0xff]
    %v452 = vld [vmem:[#allocation8 + $0x68] sm:$0xff]
    %v453 = vld [vmem:[#allocation8 + $0x70] sm:$0xff]
    %v454 = vld [vmem:[#allocation8 + $0x78] sm:$0xff]
    %v455 = vld [vmem:[%s8] sm:$0x1]
    %v457 = vlaneseq
    %v458 = vshrl.u32 %v457, 7
    %v459 = vsub.s32 0, %v458
    %v460 = vrot.slane %v455, %v459
    %462 = vmatprep.subr.mxu0 0.0
    %463 = vmatpush1.msra.mxu0 %v439
    %464 = vmatprep.subr.mxu0 0.0
    %465 = vmatpush1.msra.mxu0 %v440
    %466 = vmatprep.subr.mxu0 0.0
    %467 = vmatpush1.msra.mxu0 %v441
    %468 = vmatprep.subr.mxu0 0.0
    %469 = vmatpush1.msra.mxu0 %v442
    %470 = vmatprep.subr.mxu0 0.0
    %471 = vmatpush1.msra.mxu0 %v443
    %472 = vmatprep.subr.mxu0 0.0
    %473 = vmatpush1.msra.mxu0 %v444
    %474 = vmatprep.subr.mxu0 0.0
    %475 = vmatpush1.msra.mxu0 %v445
    %476 = vmatprep.subr.mxu0 0.0
    %477 = vmatpush1.msra.mxu0 %v446
    %478 = vmatprep.subr.mxu0 0.0
    %479 = vmatpush1.msra.mxu0 %v447
    %480 = vmatprep.subr.mxu0 0.0
    %481 = vmatpush1.msra.mxu0 %v448
    %482 = vmatprep.subr.mxu0 0.0
    %483 = vmatpush1.msra.mxu0 %v449
    %484 = vmatprep.subr.mxu0 0.0
    %485 = vmatpush1.msra.mxu0 %v450
    %486 = vmatprep.subr.mxu0 0.0
    %487 = vmatpush1.msra.mxu0 %v451
    %488 = vmatprep.subr.mxu0 0.0
    %489 = vmatpush1.msra.mxu0 %v452
    %490 = vmatprep.subr.mxu0 0.0
    %491 = vmatpush1.msra.mxu0 %v453
    %492 = vmatprep.subr.mxu0 0.0
    %493 = vmatpush1.msra.mxu0 %v454
    %494 = vmatprep.subr.mxu0 0.0
    %495 = vmatpush1.msra.mxu0 0.0
    %496 = vmatprep.subr.mxu0 0.0
    %497 = vmatpush1.msra.mxu0 0.0
    %498 = vmatprep.subr.mxu0 0.0
    %499 = vmatpush1.msra.mxu0 0.0
    %500 = vmatprep.subr.mxu0 0.0
    %501 = vmatpush1.msra.mxu0 0.0
    %502 = vmatprep.subr.mxu0 0.0
    %503 = vmatpush1.msra.mxu0 0.0
    %504 = vmatprep.subr.mxu0 0.0
    %505 = vmatpush1.msra.mxu0 0.0
    %506 = vmatprep.subr.mxu0 0.0
    %507 = vmatpush1.msra.mxu0 0.0
    %508 = vmatprep.subr.mxu0 0.0
    %509 = vmatpush1.msra.mxu0 0.0
    %510 = vmatprep.subr.mxu0 0.0
    %511 = vmatpush1.msra.mxu0 0.0
    %512 = vmatprep.subr.mxu0 0.0
    %513 = vmatpush1.msra.mxu0 0.0
    %514 = vmatprep.subr.mxu0 0.0
    %515 = vmatpush1.msra.mxu0 0.0
    %516 = vmatprep.subr.mxu0 0.0
    %517 = vmatpush1.msra.mxu0 0.0
    %518 = vmatprep.subr.mxu0 0.0
    %519 = vmatpush1.msra.mxu0 0.0
    %520 = vmatprep.subr.mxu0 0.0
    %521 = vmatpush1.msra.mxu0 0.0
    %522 = vmatprep.subr.mxu0 0.0
    %523 = vmatpush1.msra.mxu0 0.0
    %524 = vmatprep.subr.mxu0 0.0
    %525 = vmatpush1.msra.mxu0 0.0
    %526 = vmatprep.mubr.f32.mxu0 0.0
    %527 = vmatmul.mubr.f32.gmra.mrb[0].mxu0 %v438
    %v528 = vpop.f32.mrb[0].mxu0
    %v529 = vadd.f32 %v460, %v528
    %v530 = vpop.f32.mrb[0].mxu0
    %531 = vdwg.mxu0
    %v532 = vmul.f32 %v529, %v529
    %533 = vadd.xlane.f32.xlu0 %v532
    %v534 = vpop.xlane.xlu0 %533
    %v535 = vmax.f32 %v534, 1e-24
    %v536 = vrsqrt.pop %v535
    %v537 = vmul.f32 %v529, %v536
    %538 = vst [vmem:[#allocation10] sm:$0xff] %v537
    // Predicated region
    $region54: #{tpu_custom_call.1} parent=1 // pred_check
      _
    $region55: #{tpu_custom_call.1} parent=1 // pred_check_branch
      %540 = sbr.rel (0) target = $region57
    $region56: #{tpu_custom_call.1} parent=1 // pred_region
      %s542 = ssub.s32 128, 128
      %543 = vsyncadd [#allocation4], %s542
      %s545 = sshll.u32 [#allocation10], 4
      %s546 = int_to_ptr.vmem [resolvable:$true] %s545
      %548 = dma.vmem_to_hbm [thread:$0]  %s546, 128, %s9, [#allocation4]
    $region57: #{tpu_custom_call.1} parent=1 // pred_fallthru
      _
    // Predicated region
    $region58: #{tpu_custom_call.1} parent=1 // pred_check
      _
    $region59: #{tpu_custom_call.1} parent=1 // pred_check_branch
      %550 = sbr.rel (0) target = $region61
    $region60: #{tpu_custom_call.1} parent=1 // pred_region
      %551 = dma.done [#allocation4], 128
    $region61: #{tpu_custom_call.1} parent=1 // pred_fallthru
      _
    %552 = vsyncpa [#allocation3], 1
    %553 = vsyncpa [#allocation6], 1
    %554 = vsyncpa [#allocation9], 1
    %555 = vsyncpa [#allocation4], 1

</llo_original>
